<compile_context>
chip_gen: v7x
topology: tpu7x:2x2x1
jax: 0.10.0
libtpu: 0.0.40
codegen_flags: <defaults>
</compile_context>

<pallas_src>
import functools

import jax
import jax.numpy as jnp
from jax.experimental import pallas as pl
from jax.experimental.pallas import tpu as pltpu


_VMEM_CAP_BYTES = 48 << 20   # leave >=16 MiB of v7x's 64 MiB physical VMEM free
_VMEM_HEADROOM = 8 << 20     # Mosaic internal scratch + broadcast/reduce temps
_TILE_BUDGET_BYTES = 8 << 20  # per HBM-tile buffer (compute is streamed)
_CHUNK_F32_BUDGET = 1 << 20   # per-chunk f32 compute working set


def _layernorm_kernel(x_ref, alpha_ref, bias_ref, o_ref, *, d_model, eps,
                      chunk_rows):
    """LayerNorm over the lane axis, streamed over row chunks.

    x_ref/o_ref: (row_tile, d_model); alpha_ref/bias_ref: (1, d_model).
    chunk_rows evenly divides row_tile (guaranteed by the wrapper), so only
    ~chunk_rows*d_model f32 temporaries are live at any time, regardless of
    how large the DMA tile is.
    """
    row_tile = x_ref.shape[0]
    n_chunks = row_tile // chunk_rows

    # Hoist the param casts out of the chunk loop; keep them (1, d_model) and
    # let the elementwise ops broadcast along sublanes (cheap, no materialized
    # (chunk_rows, d_model) copy).
    alpha = alpha_ref[...].astype(jnp.float32)
    bias = bias_ref[...].astype(jnp.float32)
    inv_nm1 = jnp.float32(1.0 / (d_model - 1))
    eps_f = jnp.float32(eps)

    def process_chunk(r0):
        rows_slice = pl.ds(r0, chunk_rows)
        x = x_ref[rows_slice, :].astype(jnp.float32)
        mean = jnp.mean(x, axis=-1, keepdims=True)
        centered = x - mean
        # torch.var default is unbiased (divides by N-1) -> reproduce exactly.
        # Two-pass centered form kept on purpose: numerically safer than the
        # sum/sumsq one-pass form, and this kernel is HBM-bound, not XLU-bound.
        var = jnp.sum(centered * centered, axis=-1, keepdims=True) * inv_nm1
        inv = jax.lax.rsqrt(var + eps_f)
        o_ref[rows_slice, :] = (alpha * (centered * inv) + bias).astype(o_ref.dtype)

    if n_chunks == 1:
        process_chunk(0)
    else:
        def body(c, carry):
            process_chunk(pl.multiple_of(c * chunk_rows, chunk_rows))
            return carry

        jax.lax.fori_loop(0, n_chunks, body, 0, unroll=(n_chunks <= 8))


def _sublane_multiple(dtype):
    itemsize = jnp.dtype(dtype).itemsize
    if itemsize >= 4:
        return 8
    if itemsize == 2:
        return 16
    return 32


def _round_up(x, m):
    return ((x + m - 1) // m) * m


def _num_tensorcores():
    """Best-effort TensorCores-per-chip (2 on v7x, 1 on v5e/v6e). Safe fallback=1."""
    try:
        info = pltpu.get_tpu_info()
        for attr in ("num_cores", "num_tensorcores", "tensorcores_per_chip"):
            v = getattr(info, attr, None)
            if isinstance(v, int) and v > 0:
                return v
    except Exception:
        pass
    try:
        v = getattr(jax.devices()[0], "num_cores", None)
        if isinstance(v, int) and v > 0:
            return v
    except Exception:
        pass
    return 1


def _plan_tiles(rows, d_model, dtype, row_tile=None, chunk_rows=None):
    """Pick (row_tile, chunk_rows) so that:
      * row_tile is ~8 MiB of input per grid step (amortizes ~0.35us/step),
      * chunk_rows bounds the f32 compute working set to ~1 MiB per temp,
      * 2x(in+out) double-buffers + compute temps + headroom fit in 48 MiB,
      * chunk_rows evenly divides row_tile (both multiples of the sublane
        packing of `dtype`)."""
    mult = _sublane_multiple(dtype)
    itemsize = jnp.dtype(dtype).itemsize
    rows_up = max(mult, _round_up(rows, mult))

    # Compute-chunk target (f32 working set ~1 MiB per live temporary).
    chunk = max(mult, ((_CHUNK_F32_BUDGET // max(1, d_model * 4)) // mult) * mult)

    # Largest tile whose 2x(in+out) double-buffers + streamed f32 temps fit
    # under the VMEM cap with headroom for Mosaic scratch.
    avail = _VMEM_CAP_BYTES - _VMEM_HEADROOM - 3 * chunk * d_model * 4
    cap_tile = max(mult, (avail // max(1, 4 * d_model * itemsize) // mult) * mult)

    if row_tile is None:
        tile = _TILE_BUDGET_BYTES // max(1, d_model * itemsize)
        tile = max(chunk, (tile // chunk) * chunk)
        tile = min(tile, cap_tile)
        if tile >= rows_up:
            tile = rows_up
        else:
            # Only shrink to feed multiple TensorCores when the chip has >1
            # (v7x); on single-TC v5e/v6e extra grid steps buy nothing.
            ncores = _num_tensorcores()
            if ncores > 1:
                while (tile > chunk
                       and pl.cdiv(rows, tile) < 2 * ncores
                       and tile * d_model * itemsize > (1 << 20)):
                    tile = max(chunk, ((tile // 2) // chunk) * chunk)
    else:
        # Guard caller-supplied tiles: align to the sublane packing and clamp
        # so the whole working set stays under the VMEM cap.
        tile = max(mult, (int(row_tile) // mult) * mult)
        tile = min(tile, max(mult, cap_tile), rows_up)

    # chunk override (mainly for tests), then force chunk | tile.
    if chunk_rows is not None:
        chunk = max(mult, (int(chunk_rows) // mult) * mult)
    chunk = min(chunk, tile)
    while chunk > mult and tile % chunk != 0:
        chunk -= mult
    if tile % chunk != 0:
        chunk = tile
    return tile, chunk


def layer_norm_pallas(x, alpha, bias, eps=1e-6, row_tile=None, chunk_rows=None):
    """LayerNormalization over the last axis (torch.var unbiased N-1 divisor).

    x: (..., d_model); alpha, bias: (d_model,).  Requires d_model >= 2.
    NOTE: if d_model is not a multiple of 128 (e.g. the tiny demo below), the
    output stores are lane-masked and run below peak store efficiency; typical
    transformer d_model (512/768/1024) is lane-dense and unaffected.
    """
    orig_shape = x.shape
    d_model = orig_shape[-1]
    if d_model < 2:
        raise ValueError("d_model must be >= 2 for unbiased variance (N-1).")

    x2 = x.reshape(-1, d_model)
    rows = x2.shape[0]
    itemsize = jnp.dtype(x2.dtype).itemsize

    row_tile, chunk_rows = _plan_tiles(rows, d_model, x2.dtype,
                                       row_tile=row_tile, chunk_rows=chunk_rows)

    grid = (pl.cdiv(rows, row_tile),)

    # VMEM accounting: double-buffered input + output tiles, streamed f32
    # compute temporaries (a few live chunk-sized values), params, headroom.
    per_buf = row_tile * d_model * itemsize
    compute_bytes = 3 * chunk_rows * d_model * 4
    param_bytes = 4 * d_model * 4
    vmem_bytes = 4 * per_buf + compute_bytes + param_bytes + _VMEM_HEADROOM
    vmem_bytes = int(min(max(vmem_bytes, 16 << 20), _VMEM_CAP_BYTES))

    alpha2 = alpha.reshape(1, d_model)
    bias2 = bias.reshape(1, d_model)

    kernel = functools.partial(_layernorm_kernel, d_model=d_model, eps=eps,
                               chunk_rows=chunk_rows)

    out = pl.pallas_call(
        kernel,
        out_shape=jax.ShapeDtypeStruct((rows, d_model), x2.dtype),
        grid_spec=pltpu.PrefetchScalarGridSpec(
            num_scalar_prefetch=0,
            grid=grid,
            in_specs=[
                pl.BlockSpec((row_tile, d_model), lambda i: (i, 0)),
                # Constant index_map -> same block every step, no re-DMA.
                pl.BlockSpec((1, d_model), lambda i: (0, 0)),
                pl.BlockSpec((1, d_model), lambda i: (0, 0)),
            ],
            out_specs=pl.BlockSpec((row_tile, d_model), lambda i: (i, 0)),
        ),
        compiler_params=pltpu.CompilerParams(
            # Single fully-parallel grid axis; on v7x this lets the runtime
            # shard steps across both TensorCores, no-op on v5e/v6e.
            dimension_semantics=("parallel",),
            vmem_limit_bytes=vmem_bytes,
        ),
    )(x2, alpha2, bias2)

    return out.reshape(orig_shape)


def decoder_forward(x, encoder_output, src_mask, tgt_mask, layers, alpha, bias,
                    eps=1e-6):
    """Mirrors Decoder.forward: run the (opaque) decoder blocks, then the
    final LayerNormalization as a Pallas kernel."""
    # TODO(synk): Decoder.layers is an externally-supplied nn.ModuleList of
    # decoder blocks with no definition in this module; they are applied here
    # as opaque JAX callables, not as Pallas kernels.
    for layer in layers:
        x = layer(x, encoder_output, src_mask, tgt_mask)
    return layer_norm_pallas(x, alpha, bias, eps=eps)


def _layernorm_ref(x, alpha, bias, eps=1e-6):
    x32 = x.astype(jnp.float32)
    d_model = x.shape[-1]
    mean = jnp.mean(x32, axis=-1, keepdims=True)
    var = jnp.sum((x32 - mean) ** 2, axis=-1, keepdims=True) / (d_model - 1)
    y = alpha.astype(jnp.float32) * ((x32 - mean) / jnp.sqrt(var + eps)) + bias.astype(jnp.float32)
    return y.astype(x.dtype)


if __name__ == "__main__":
    batch, seq, d_model = 2, 8, 32
    key = jax.random.PRNGKey(0)
    kx, ke = jax.random.split(key)
    x = jax.random.normal(kx, (batch, seq, d_model), dtype=jnp.float32)
    encoder_output = jax.random.normal(ke, (batch, seq, d_model), dtype=jnp.float32)
    src_mask = jnp.ones((batch, 1, 1, seq), dtype=jnp.float32)
    tgt_mask = jnp.tril(jnp.ones((seq, seq), dtype=jnp.float32))[None, None]

    # Parameters match nn.Parameter(torch.ones/zeros(d_model)).
    alpha = jnp.ones((d_model,), dtype=jnp.float32)
    bias = jnp.zeros((d_model,), dtype=jnp.float32)

    # Decoder with no resident layers (layers are externally supplied).
    out = decoder_forward(x, encoder_output, src_mask, tgt_mask, layers=(),
                          alpha=alpha, bias=bias, eps=1e-6)
    out = jax.block_until_ready(out)
    ref = _layernorm_ref(x, alpha, bias, eps=1e-6)
    assert jnp.allclose(out, ref, atol=1e-5, rtol=1e-5), "mismatch vs reference"

    # Ragged-last-block path (rows not a multiple of row_tile, no host padding):
    # 3*7 = 21 rows with an 8-row tile -> grid of 3.
    x2 = jax.random.normal(jax.random.PRNGKey(1), (3, 7, d_model), jnp.float32)
    out2 = jax.block_until_ready(layer_norm_pallas(x2, alpha, bias, row_tile=8))
    ref2 = _layernorm_ref(x2, alpha, bias)
    assert jnp.allclose(out2, ref2, atol=1e-5, rtol=1e-5), "ragged-grid mismatch"

    # Streamed-compute (in-kernel chunk loop) path: 64 rows, 4 chunks of 16.
    d3 = 128
    alpha3 = jnp.ones((d3,), jnp.float32) * 1.5
    bias3 = jnp.full((d3,), 0.25, jnp.float32)
    x3 = jax.random.normal(jax.random.PRNGKey(2), (4, 16, d3), jnp.float32)
    out3 = jax.block_until_ready(
        layer_norm_pallas(x3, alpha3, bias3, row_tile=64, chunk_rows=16))
    ref3 = _layernorm_ref(x3, alpha3, bias3)
    assert jnp.allclose(out3, ref3, atol=1e-5, rtol=1e-5), "chunked-path mismatch"

    # bf16 path (16-row sublane packing, f32 compute in-kernel).
    x4 = jax.random.normal(jax.random.PRNGKey(3), (2, 16, d3), jnp.bfloat16)
    out4 = jax.block_until_ready(
        layer_norm_pallas(x4, alpha3.astype(jnp.bfloat16), bias3.astype(jnp.bfloat16)))
    ref4 = _layernorm_ref(x4, alpha3.astype(jnp.bfloat16), bias3.astype(jnp.bfloat16))
    assert jnp.allclose(out4.astype(jnp.float32), ref4.astype(jnp.float32),
                        atol=3e-2, rtol=3e-2), "bf16 mismatch"

    print("KERNEL_OK")
</pallas_src>

<mosaic_0001>
module attributes {stable_mosaic.version = 11 : i64} {
  func.func @_layernorm_kernel(%arg0: i32, %arg1: memref<16x32xf32, #tpu.memory_space<vmem>>, %arg2: memref<1x32xf32, #tpu.memory_space<vmem>>, %arg3: memref<1x32xf32, #tpu.memory_space<vmem>>, %arg4: memref<16x32xf32, #tpu.memory_space<vmem>>) attributes {dimension_semantics = [#tpu.dimension_semantics<parallel>], iteration_bounds = array<i64: 1>, scalar_prefetch = 0 : i64, scratch_operands = 0 : i64, tpu.core_type = #tpu.core_type<tc>, window_params = [{transform_indices = @transform_0, window_bounds = array<i64: 16, 32>}, {pipeline_mode = #tpu.pipeline_mode<synchronous>, transform_indices = @transform_1, window_bounds = array<i64: 1, 32>}, {pipeline_mode = #tpu.pipeline_mode<synchronous>, transform_indices = @transform_2, window_bounds = array<i64: 1, 32>}, {transform_indices = @transform_3, window_bounds = array<i64: 16, 32>}]} {
    %c0 = arith.constant 0 : index
    %c0_0 = arith.constant 0 : index
    %0 = vector.load %arg2[%c0, %c0_0] : memref<1x32xf32, #tpu.memory_space<vmem>>, vector<1x32xf32>
    %c0_1 = arith.constant 0 : index
    %c0_2 = arith.constant 0 : index
    %1 = vector.load %arg3[%c0_1, %c0_2] : memref<1x32xf32, #tpu.memory_space<vmem>>, vector<1x32xf32>
    %c0_3 = arith.constant 0 : index
    %c0_4 = arith.constant 0 : index
    %2 = vector.load %arg1[%c0_3, %c0_4] : memref<16x32xf32, #tpu.memory_space<vmem>>, vector<16x32xf32>
    %cst = arith.constant dense<0.000000e+00> : vector<16xf32>
    %3 = vector.multi_reduction <add>, %2, %cst [1] : vector<16x32xf32> to vector<16xf32>
    %4 = vector.shape_cast %3 : vector<16xf32> to vector<16x1xf32>
    %cst_5 = arith.constant 3.200000e+01 : f32
    %5 = vector.broadcast %cst_5 : f32 to vector<16x1xf32>
    %6 = arith.divf %4, %5 : vector<16x1xf32>
    %7 = vector.broadcast %6 : vector<16x1xf32> to vector<16x32xf32>
    %8 = arith.subf %2, %7 : vector<16x32xf32>
    %9 = arith.mulf %8, %8 : vector<16x32xf32>
    %cst_6 = arith.constant dense<0.000000e+00> : vector<16xf32>
    %10 = vector.multi_reduction <add>, %9, %cst_6 [1] : vector<16x32xf32> to vector<16xf32>
    %11 = vector.shape_cast %10 : vector<16xf32> to vector<16x1xf32>
    %cst_7 = arith.constant 0.0322580636 : f32
    %12 = vector.broadcast %cst_7 : f32 to vector<16x1xf32>
    %13 = arith.mulf %11, %12 : vector<16x1xf32>
    %cst_8 = arith.constant 9.99999997E-7 : f32
    %14 = vector.broadcast %cst_8 : f32 to vector<16x1xf32>
    %15 = arith.addf %13, %14 : vector<16x1xf32>
    %16 = math.rsqrt %15 : vector<16x1xf32>
    %17 = vector.broadcast %16 : vector<16x1xf32> to vector<16x32xf32>
    %18 = arith.mulf %8, %17 : vector<16x32xf32>
    %19 = vector.broadcast %0 : vector<1x32xf32> to vector<16x32xf32>
    %20 = arith.mulf %19, %18 : vector<16x32xf32>
    %21 = vector.broadcast %1 : vector<1x32xf32> to vector<16x32xf32>
    %22 = arith.addf %20, %21 : vector<16x32xf32>
    %c0_9 = arith.constant 0 : index
    %c0_10 = arith.constant 0 : index
    %23 = vector.load %arg4[%c0_9, %c0_10] : memref<16x32xf32, #tpu.memory_space<vmem>>, vector<16x32xf32>
    tpu.vector_store %arg4[%c0_9, %c0_10], %22 {strides = array<i32>} : memref<16x32xf32, #tpu.memory_space<vmem>>, vector<16x32xf32>,
    return
  }
  func.func @transform_0(%arg0: i32) -> (i32, i32) {
    %c0_i32 = arith.constant 0 : i32
    %c0_i32_0 = arith.constant 0 : i32
    return %arg0, %c0_i32 : i32, i32
  }
  func.func @transform_1(%arg0: i32) -> (i32, i32) {
    %c0_i32 = arith.constant 0 : i32
    %c0_i32_0 = arith.constant 0 : i32
    %c0_i32_1 = arith.constant 0 : i32
    return %c0_i32, %c0_i32_0 : i32, i32
  }
  func.func @transform_2(%arg0: i32) -> (i32, i32) {
    %c0_i32 = arith.constant 0 : i32
    %c0_i32_0 = arith.constant 0 : i32
    %c0_i32_1 = arith.constant 0 : i32
    return %c0_i32, %c0_i32_0 : i32, i32
  }
  func.func @transform_3(%arg0: i32) -> (i32, i32) {
    %c0_i32 = arith.constant 0 : i32
    %c0_i32_0 = arith.constant 0 : i32
    return %arg0, %c0_i32 : i32, i32
  }
}

</mosaic_0001>

<llo_original>
// kernel: tpu_custom_call.1
$region0: #{tpu_custom_call.1}
  #allocation0 [shape = 'u32[]', space=smem, size = 0x4, offset = 0x4, fixed_abs, tag = 'smem constant byte address 0x4 - core index']
  #allocation1 [shape = 'u32[144,128]{1,0:T(1,128)}', space=vmem, size = 0x12000, scoped, tag = 'internal scratch']
  %s0 = inlined_call_operand.hbm [shape: f32[16,32], index: 0, kind: input, shape index: {}]
  %s1 = inlined_call_operand.vmem [shape: f32[1,32], index: 1, kind: input, shape index: {}]
  %s2 = inlined_call_operand.vmem [shape: f32[1,32], index: 2, kind: input, shape index: {}]
  %s3 = inlined_call_operand.hbm [shape: f32[16,32], index: 3, kind: output, shape index: {}]
  %s4 = sld [smem:[#allocation0]]
  $region26: #{tpu_custom_call.1} parent=0
    _
  %s6 = ssub.s32 1, %s4
  %s7 = scalar_select 0, %s6, %s4
  $region1: #{tpu_custom_call.1} parent=0
    #allocation2 [shape = 'u8[8192]{0}', space=vmem, size = 0x2000, scoped, tag = 'input window, operand 0, single buffered']
    #allocation3 [shape = 's32[1]{0}', space=sflag, size = 0x4, scoped, tag = 'scoped memory for tpu_custom_call.1']
    #allocation4 [shape = 's32[1]{0}', space=sflag, size = 0x4, scoped, tag = 'scoped memory for tpu_custom_call.1']
    #allocation5 [shape = 'u8[8192]{0}', space=vmem, size = 0x2000, scoped, tag = 'output window, operand 0, single buffered']
    %8 = vsyncpa [#allocation3], 0
    %9 = vsyncpa [#allocation4], 0
    // Predicated region
    $region2: #{tpu_custom_call.1} parent=1 // pred_check
      _
    $region3: #{tpu_custom_call.1} parent=1 // pred_check_branch
      %11 = sbr.rel (0) target = $region5
    $region4: #{tpu_custom_call.1} parent=1 // pred_region
      %s13 = ssub.s32 256, 256
      %14 = vsyncadd [#allocation3], %s13
      %s15 = sshll.u32 [#allocation2], 4
      %s16 = int_to_ptr.vmem [resolvable:$true] %s15
      %21 = dma.hbm_to_vmem [thread:$0]  %s0, 256, %s16, [#allocation3], 128, 128, 8
    $region5: #{tpu_custom_call.1} parent=1 // pred_fallthru
      _
    // Predicated region
    $region6: #{tpu_custom_call.1} parent=1 // pred_check
      _
    $region7: #{tpu_custom_call.1} parent=1 // pred_check_branch
      %23 = sbr.rel (0) target = $region9
    $region8: #{tpu_custom_call.1} parent=1 // pred_region
      _
    $region9: #{tpu_custom_call.1} parent=1 // pred_fallthru
      _
    // Predicated region
    $region10: #{tpu_custom_call.1} parent=1 // pred_check
      _
    $region11: #{tpu_custom_call.1} parent=1 // pred_check_branch
      %25 = sbr.rel (0) target = $region13
    $region12: #{tpu_custom_call.1} parent=1 // pred_region
      _
    $region13: #{tpu_custom_call.1} parent=1 // pred_fallthru
      _
    // Predicated region
    $region14: #{tpu_custom_call.1} parent=1 // pred_check
      _
    $region15: #{tpu_custom_call.1} parent=1 // pred_check_branch
      %27 = sbr.rel (0) target = $region17
    $region16: #{tpu_custom_call.1} parent=1 // pred_region
      %28 = dma.done [#allocation3], 256
    $region17: #{tpu_custom_call.1} parent=1 // pred_fallthru
      _
    %v29 = vld [vmem:[%s1] sm:$0x1]
    %v30 = vld [vmem:[%s2] sm:$0x1]
    %v31 = vld [vmem:[#allocation2] sm:$0xff]
    %v32 = vld [vmem:[#allocation2 + $0x8] sm:$0xff]
    %vm33 = vcmask 261120
    %v34 = vsel %vm33, %v31, 0.0
    %35 = vadd.xlane.f32.xlu0 %v34
    %v36 = vpop.xlane.xlu0 %35
    %v37 = vsel %vm33, %v32, 0.0
    %38 = vadd.xlane.f32.xlu0 %v37
    %v39 = vpop.xlane.xlu0 %38
    %v40 = vrcp.pop 32.0
    %v41 = vmul.f32 %v36, %v40
    %v42 = vmul.f32 %v39, %v40
    %v43 = vsub.f32 %v31, %v41
    %v44 = vsub.f32 %v32, %v42
    %v45 = vmul.f32 %v43, %v43
    %v46 = vmul.f32 %v44, %v44
    %v47 = vsel %vm33, %v45, 0.0
    %48 = vadd.xlane.f32.xlu0 %v47
    %v49 = vpop.xlane.xlu0 %48
    %v50 = vsel %vm33, %v46, 0.0
    %51 = vadd.xlane.f32.xlu0 %v50
    %v52 = vpop.xlane.xlu0 %51
    %v53 = vmul.f32 %v49, 0.032258064
    %v54 = vmul.f32 %v52, 0.032258064
    %v55 = vadd.f32 %v53, 1e-06
    %v56 = vadd.f32 %v54, 1e-06
    %v57 = vrsqrt.pop %v55
    %v58 = vrsqrt.pop %v56
    %v59 = vmul.f32 %v43, %v57
    %v60 = vmul.f32 %v44, %v58
    %v62 = vlaneseq
    %v63 = vshrl.u32 %v62, 7
    %v64 = vsub.s32 0, %v63
    %v65 = vrot.slane %v29, %v64
    %v67 = vmul.f32 %v65, %v59
    %v68 = vmul.f32 %v65, %v60
    %v70 = vlaneseq
    %v71 = vshrl.u32 %v70, 7
    %v72 = vsub.s32 0, %v71
    %v73 = vrot.slane %v30, %v72
    %v75 = vadd.f32 %v67, %v73
    %v76 = vadd.f32 %v68, %v73
    %77 = vst.msk [vmem:[#allocation5] sm:$0xff] %vm33, %v75
    %78 = vst.msk [vmem:[#allocation5 + $0x8] sm:$0xff] %vm33, %v76
    // Predicated region
    $region18: #{tpu_custom_call.1} parent=1 // pred_check
      _
    $region19: #{tpu_custom_call.1} parent=1 // pred_check_branch
      %80 = sbr.rel (0) target = $region21
    $region20: #{tpu_custom_call.1} parent=1 // pred_region
      %s82 = ssub.s32 256, 256
      %83 = vsyncadd [#allocation4], %s82
      %s84 = sshll.u32 [#allocation5], 4
      %s85 = int_to_ptr.vmem [resolvable:$true] %s84
      %90 = dma.vmem_to_hbm [thread:$0]  %s85, 256, %s3, [#allocation4], 128, 128, 8
    $region21: #{tpu_custom_call.1} parent=1 // pred_fallthru
      _
    // Predicated region
    $region22: #{tpu_custom_call.1} parent=1 // pred_check
      _
    $region23: #{tpu_custom_call.1} parent=1 // pred_check_branch
      %92 = sbr.rel (0) target = $region25
    $region24: #{tpu_custom_call.1} parent=1 // pred_region
      %93 = dma.done [#allocation4], 256
    $region25: #{tpu_custom_call.1} parent=1 // pred_fallthru
      _
    %94 = vsyncpa [#allocation3], 1
    %95 = vsyncpa [#allocation4], 1

</llo_original>
